<compile_context>
chip_gen: v5e
topology: v5e:2x2
jax: 0.10.0
libtpu: 0.0.40
codegen_flags: <defaults>
</compile_context>

<pallas_src>
import functools

import jax
import jax.numpy as jnp
from jax import lax
from jax.experimental import pallas as pl
from jax.experimental.pallas import tpu as pltpu


def ntxent_kernel(reps_ref, loss_ref, *, temperature):
    # reps: (2N, D) = concat([zjs, zis], axis=0), concatenated in the wrapper.
    reps = reps_ref[...].astype(jnp.float32)
    n2 = reps.shape[0]
    n = n2 // 2
    inv_t = jnp.float32(1.0 / temperature)

    # Row normalization (EUP rsqrt). Clamp matches torch's eps=1e-8 on the
    # norm product (per-row clamp at eps^2 on the squared norm).
    sq_norm = jnp.sum(reps * reps, axis=-1, keepdims=True)              # (2N, 1)
    inv_norm = lax.rsqrt(jnp.maximum(sq_norm, jnp.float32(1e-16)))      # (2N, 1)
    a = reps * (inv_norm * inv_t)                                       # (2N, D)  (1/T folded here)
    b = reps * inv_norm                                                 # (2N, D)

    # Single MXU matmul: logits[i,j] = <r_i, r_j> / (||r_i|| ||r_j||) / T.
    # Contracting the last dim of both operands avoids an explicit transpose.
    # TODO(synk): cast a/b to bfloat16 on v6e/v7x at production sizes; kept
    # f32 here so the tiny self-test stays within 1e-4 of the f32 reference.
    logits = lax.dot_general(
        a, b,
        dimension_numbers=(((1,), (1,)), ((), ())),
        preferred_element_type=jnp.float32,
    )                                                                    # (2N, 2N)

    # logsumexp over j != i with the constant max 1/T (cosine sim <= 1, so
    # exp(logits - 1/T) <= ~1 and is numerically safe in f32).
    row = lax.broadcasted_iota(jnp.int32, (n2, n2), 0)
    col = lax.broadcasted_iota(jnp.int32, (n2, n2), 1)
    masked = jnp.where(row == col, jnp.float32(-jnp.inf), logits)
    lse = inv_t + jnp.log(jnp.sum(jnp.exp(masked - inv_t),
                                  axis=-1, keepdims=True))               # (2N, 1)

    # Positive logits: row i pairs with row (i + N) mod 2N; cosine similarity
    # is symmetric, so one (N,) vector of row-wise dots covers both halves.
    pos = jnp.sum(a[:n] * b[n:], axis=-1, keepdims=True)                 # (N, 1)

    # loss = sum_i (lse_i - pos_i) / (2N), each positive counted twice.
    loss_ref[0, 0] = (jnp.sum(lse) - 2.0 * jnp.sum(pos)) / jnp.float32(n2)


def ntxent_loss(zis, zjs, temperature=0.1):
    # Concatenate in the wrapper: free XLA copy/fusion, and the kernel then
    # takes a single lane-/sublane-aligned (2N, D) input.
    reps = jnp.concatenate([zjs, zis], axis=0)
    kernel = functools.partial(ntxent_kernel, temperature=float(temperature))
    out = pl.pallas_call(
        kernel,
        out_shape=jax.ShapeDtypeStruct((1, 1), jnp.float32),
        in_specs=[pl.BlockSpec(memory_space=pltpu.MemorySpace.VMEM)],
        out_specs=pl.BlockSpec(memory_space=pltpu.MemorySpace.SMEM),
    )(reps)
    return out[0, 0]


def ntxent_loss_ref(zis, zjs, temperature=0.1):
    """Pure-JAX reference mirroring the PyTorch forward, for validation."""
    reps = jnp.concatenate([zjs, zis], axis=0)
    n = zis.shape[0]
    n2 = 2 * n
    norm = jnp.linalg.norm(reps, axis=-1, keepdims=True)
    sim = (reps @ reps.T) / jnp.maximum(norm * norm.T, 1e-8)
    logits = sim / temperature
    idx = jnp.arange(n2)
    masked = jnp.where(idx[:, None] == idx[None, :], -jnp.inf, logits)
    lse = jax.scipy.special.logsumexp(masked, axis=-1)
    pos = logits[idx, (idx + n) % n2]
    return jnp.mean(lse - pos)


if __name__ == "__main__":
    batch_size, dim = 8, 32
    key = jax.random.PRNGKey(0)
    k1, k2 = jax.random.split(key)
    zis = jax.random.normal(k1, (batch_size, dim), dtype=jnp.float32)
    zjs = jax.random.normal(k2, (batch_size, dim), dtype=jnp.float32)

    loss = ntxent_loss(zis, zjs, temperature=0.1)
    jax.block_until_ready(loss)

    ref = ntxent_loss_ref(zis, zjs, temperature=0.1)
    assert jnp.allclose(loss, ref, atol=1e-4, rtol=1e-4), (loss, ref)

    print("KERNEL_OK")
</pallas_src>

<mosaic_0001>
module attributes {stable_mosaic.version = 11 : i64} {
  func.func @ntxent_kernel(%arg0: memref<16x32xf32, #tpu.memory_space<vmem>>, %arg1: memref<1x1xf32, #tpu.memory_space<smem>>) attributes {dimension_semantics = [], scalar_prefetch = 0 : i64, scratch_operands = 0 : i64, tpu.core_type = #tpu.core_type<tc>} {
    %c0 = arith.constant 0 : index
    %c0_0 = arith.constant 0 : index
    %0 = vector.load %arg0[%c0, %c0_0] : memref<16x32xf32, #tpu.memory_space<vmem>>, vector<16x32xf32>
    %1 = arith.mulf %0, %0 : vector<16x32xf32>
    %cst = arith.constant dense<0.000000e+00> : vector<16xf32>
    %2 = vector.multi_reduction <add>, %1, %cst [1] : vector<16x32xf32> to vector<16xf32>
    %3 = vector.shape_cast %2 : vector<16xf32> to vector<16x1xf32>
    %cst_1 = arith.constant 1.000000e-16 : f32
    %4 = vector.broadcast %cst_1 : f32 to vector<16x1xf32>
    %5 = arith.maximumf %3, %4 : vector<16x1xf32>
    %6 = math.rsqrt %5 : vector<16x1xf32>
    %cst_2 = arith.constant 1.000000e+01 : f32
    %7 = vector.broadcast %cst_2 : f32 to vector<16x1xf32>
    %8 = arith.mulf %6, %7 : vector<16x1xf32>
    %9 = vector.broadcast %8 : vector<16x1xf32> to vector<16x32xf32>
    %10 = arith.mulf %0, %9 : vector<16x32xf32>
    %11 = vector.broadcast %6 : vector<16x1xf32> to vector<16x32xf32>
    %12 = arith.mulf %0, %11 : vector<16x32xf32>
    %cst_3 = arith.constant dense<0.000000e+00> : vector<16x16xf32>
    %13 = tpu.matmul %10, %12, %cst_3 {dimension_numbers = #tpu.dot_dimension_numbers<[1], [1], [0], [0], [0, 0, 1, 0], [], []>} : vector<16x32xf32>, vector<16x32xf32>, vector<16x16xf32> -> vector<16x16xf32>
    %14 = tpu.iota {dimensions = array<i32: 0>} : vector<16x16xi32>
    %15 = tpu.iota {dimensions = array<i32: 1>} : vector<16x16xi32>
    %16 = arith.cmpi eq, %14, %15 : vector<16x16xi32>
    %cst_4 = arith.constant 0xFF800000 : f32
    %17 = vector.broadcast %cst_4 : f32 to vector<16x16xf32>
    %18 = arith.select %16, %17, %13 : vector<16x16xi1>, vector<16x16xf32>
    %cst_5 = arith.constant 1.000000e+01 : f32
    %19 = vector.broadcast %cst_5 : f32 to vector<16x16xf32>
    %20 = arith.subf %18, %19 : vector<16x16xf32>
    %21 = math.exp %20 : vector<16x16xf32>
    %cst_6 = arith.constant dense<0.000000e+00> : vector<16xf32>
    %22 = vector.multi_reduction <add>, %21, %cst_6 [1] : vector<16x16xf32> to vector<16xf32>
    %23 = vector.shape_cast %22 : vector<16xf32> to vector<16x1xf32>
    %24 = math.log %23 : vector<16x1xf32>
    %cst_7 = arith.constant 1.000000e+01 : f32
    %25 = vector.broadcast %cst_7 : f32 to vector<16x1xf32>
    %26 = arith.addf %25, %24 : vector<16x1xf32>
    %27 = vector.extract_strided_slice %10 {offsets = [0, 0], sizes = [8, 32], strides = [1, 1]} : vector<16x32xf32> to vector<8x32xf32>
    %28 = vector.extract_strided_slice %12 {offsets = [8, 0], sizes = [8, 32], strides = [1, 1]} : vector<16x32xf32> to vector<8x32xf32>
    %29 = arith.mulf %27, %28 : vector<8x32xf32>
    %cst_8 = arith.constant dense<0.000000e+00> : vector<8xf32>
    %30 = vector.multi_reduction <add>, %29, %cst_8 [1] : vector<8x32xf32> to vector<8xf32>
    %31 = vector.shape_cast %30 : vector<8xf32> to vector<8x1xf32>
    %32 = vector.shape_cast %26 : vector<16x1xf32> to vector<1x16x1xf32>
    %cst_9 = arith.constant dense<0.000000e+00> : vector<1xf32>
    %33 = vector.multi_reduction <add>, %32, %cst_9 [1, 2] : vector<1x16x1xf32> to vector<1xf32>
    %34 = vector.shape_cast %33 : vector<1xf32> to vector<1x1x1xf32>
    %35 = vector.extract %34[0, 0, 0] : f32 from vector<1x1x1xf32>
    %36 = vector.shape_cast %31 : vector<8x1xf32> to vector<1x8x1xf32>
    %cst_10 = arith.constant dense<0.000000e+00> : vector<1xf32>
    %37 = vector.multi_reduction <add>, %36, %cst_10 [1, 2] : vector<1x8x1xf32> to vector<1xf32>
    %38 = vector.shape_cast %37 : vector<1xf32> to vector<1x1x1xf32>
    %39 = vector.extract %38[0, 0, 0] : f32 from vector<1x1x1xf32>
    %cst_11 = arith.constant 2.000000e+00 : f32
    %40 = arith.mulf %cst_11, %39 : f32
    %41 = arith.subf %35, %40 : f32
    %cst_12 = arith.constant 1.600000e+01 : f32
    %42 = arith.divf %41, %cst_12 : f32
    %c0_13 = arith.constant 0 : index
    %c0_14 = arith.constant 0 : index
    %43 = memref.load %arg1[%c0_13, %c0_14] : memref<1x1xf32, #tpu.memory_space<smem>>
    memref.store %42, %arg1[%c0_13, %c0_14] : memref<1x1xf32, #tpu.memory_space<smem>>
    return
  }
}

</mosaic_0001>

<llo_original>
// kernel: tpu_custom_call.1
$region0: #{tpu_custom_call.1}
  #allocation0 [shape = 'u32[]', space=smem, size = 0x4, offset = 0x4, fixed_abs, tag = 'smem constant byte address 0x4 - core index']
  #allocation1 [shape = 'u32[72,128]{1,0:T(1,128)}', space=vmem, size = 0x9000, scoped, tag = 'internal scratch']
  %s0 = inlined_call_operand.hbm [shape: f32[16,32], index: 0, kind: input, shape index: {}]
  %s1 = inlined_call_operand.hbm [shape: f32[1,1], index: 1, kind: output, shape index: {}]
  %s2 = sld [smem:[#allocation0]]
  $region18: #{tpu_custom_call.1} parent=0
    _
  %s4 = ssub.s32 1, %s2
  %s5 = scalar_select 0, %s4, %s2
  $region1: #{tpu_custom_call.1} parent=0
    #allocation2 [shape = 'u8[8192]{0}', space=vmem, size = 0x2000, scoped, tag = 'input window, operand 0, single buffered']
    #allocation3 [shape = 's32[1]{0}', space=sflag, size = 0x4, scoped, tag = 'scoped memory for tpu_custom_call.1']
    #allocation4 [shape = 's32[1]{0}', space=sflag, size = 0x4, scoped, tag = 'scoped memory for tpu_custom_call.1']
    #allocation5 [shape = 'u8[512]{0}', space=smem, size = 0x200, scoped, tag = 'output window, operand 0, single buffered']
    %6 = vsyncpa [#allocation3], 0
    %7 = vsyncpa [#allocation4], 0
    // Predicated region
    $region2: #{tpu_custom_call.1} parent=1 // pred_check
      _
    $region3: #{tpu_custom_call.1} parent=1 // pred_check_branch
      %9 = sbr.rel (0) target = $region5
    $region4: #{tpu_custom_call.1} parent=1 // pred_region
      %11 = vsyncadd [#allocation3], 0
      %s12 = sshll.u32 %s0, 4
      %s13 = int_to_ptr.hbm [resolvable:$true] %s12
      %s14 = sshll.u32 [#allocation2], 4
      %s15 = int_to_ptr.vmem [resolvable:$true] %s14
      %20 = dma.hbm_to_vmem [thread:$0]  %s13, 256, %s15, [#allocation3], 128, 128, 8
    $region5: #{tpu_custom_call.1} parent=1 // pred_fallthru
      _
    // Predicated region
    $region6: #{tpu_custom_call.1} parent=1 // pred_check
      _
    $region7: #{tpu_custom_call.1} parent=1 // pred_check_branch
      %22 = sbr.rel (0) target = $region9
    $region8: #{tpu_custom_call.1} parent=1 // pred_region
      %24 = dma.done [#allocation3], 256
    $region9: #{tpu_custom_call.1} parent=1 // pred_fallthru
      _
    %v25 = vld [vmem:[#allocation2] sm:$0xff]
    %v26 = vld [vmem:[#allocation2 + $0x8] sm:$0xff]
    %v27 = vmul.f32 %v25, %v25
    %v28 = vmul.f32 %v26, %v26
    %vm29 = vcmask 261120
    %v30 = vsel %vm29, %v27, 0.0
    %31 = vadd.xlane.f32.xlu0 %v30
    %v32 = vpop.xlane.xlu0 %31
    %v33 = vsel %vm29, %v28, 0.0
    %34 = vadd.xlane.f32.xlu0 %v33
    %v35 = vpop.xlane.xlu0 %34
    %v36 = vmax.f32 %v32, 1e-16
    %v37 = vmax.f32 %v35, 1e-16
    %v38 = vrsqrt.pop %v36
    %v39 = vmul.f32 %v38, %v36
    %v40 = vmul.f32 %v39, %v38
    %v41 = vmul.f32 0.5, %v40
    %v42 = vsub.f32 1.5, %v41
    %v43 = vmul.f32 %v38, %v42
    %vm44 = vweird.f32 %v36
    %vm45 = vweird.f32 %v38
    %vm46 = vmor %vm44, %vm45
    %v47 = vsel %vm46, %v38, %v43
    %v48 = vrsqrt.pop %v37
    %v49 = vmul.f32 %v48, %v37
    %v50 = vmul.f32 %v49, %v48
    %v51 = vmul.f32 0.5, %v50
    %v52 = vsub.f32 1.5, %v51
    %v53 = vmul.f32 %v48, %v52
    %vm54 = vweird.f32 %v37
    %vm55 = vweird.f32 %v48
    %vm56 = vmor %vm54, %vm55
    %v57 = vsel %vm56, %v48, %v53
    %v58 = vmul.f32 %v47, 10.0
    %v59 = vmul.f32 %v57, 10.0
    %v60 = vmul.f32 %v25, %v58
    %v61 = vmul.f32 %v26, %v59
    %v62 = vmul.f32 %v25, %v47
    %v63 = vmul.f32 %v26, %v57
    %v65 = vsel %vm29, %v60, 0
    %v68 = vsel %vm29, %v61, 0
    %v71 = vsel %vm29, %v62, 0
    %v74 = vsel %vm29, %v63, 0
    %76 = vmatpush.xpose.msra.mxu0 0.0
    %77 = vmatpush.xpose.msra.mxu0 0.0
    %78 = vmatpush.xpose.msra.mxu0 0.0
    %79 = vmatpush.xpose.msra.mxu0 0.0
    %80 = vmatpush.xpose.msra.mxu0 0.0
    %81 = vmatpush.xpose.msra.mxu0 0.0
    %82 = vmatpush.xpose.msra.mxu0 0.0
    %83 = vmatpush.xpose.msra.mxu0 0.0
    %84 = vmatpush.xpose.msra.mxu0 0.0
    %85 = vmatpush.xpose.msra.mxu0 0.0
    %86 = vmatpush.xpose.msra.mxu0 0.0
    %87 = vmatpush.xpose.msra.mxu0 0.0
    %88 = vmatpush.xpose.msra.mxu0 0.0
    %89 = vmatpush.xpose.msra.mxu0 0.0
    %90 = vmatpush.xpose.msra.mxu0 %v74
    %91 = vmatpush.xpose.msra.mxu0 %v71
    %92 = vmatmul.f32.gmra.mxu0 %v65
    %v93 = vpop.f32.mrf.mxu0
    %v94 = vadd.f32 0.0, %v93
    %95 = vmatmul.f32.gmra.mxu0 %v68
    %v96 = vpop.f32.mrf.mxu0
    %v97 = vadd.f32 0.0, %v96
    %98 = vdwg.mxu0
    %v99 = vlaneseq
    %v100 = vshrl.u32 %v99, 7
    %v101 = vadd.s32 %v100, 8
    %v102 = vlaneseq
    %v103 = vand.u32 %v102, 127
    %vm104 = vcmp.eq.s32.totalorder %v100, %v103
    %vm105 = vcmp.eq.s32.totalorder %v101, %v103
    %v106 = vsel %vm104, -inf, %v94
    %v107 = vsel %vm105, -inf, %v97
    %v108 = vsub.f32 %v106, 10.0
    %v109 = vsub.f32 %v107, 10.0
    %v110 = vmul.f32 %v108, 1.442695
    %v111 = vpow.pop %v110
    %v112 = vmul.f32 %v109, 1.442695
    %v113 = vpow.pop %v112
    %vm114 = vcmask 130048
    %v115 = vsel %vm114, %v111, 0.0
    %116 = vadd.xlane.f32.xlu0 %v115
    %v117 = vpop.xlane.xlu0 %116
    %v118 = vsel %vm114, %v113, 0.0
    %119 = vadd.xlane.f32.xlu0 %v118
    %v120 = vpop.xlane.xlu0 %119
    %v121 = vlog2.pop %v117
    %v122 = vmul.f32 %v121, 0.6931472
    %v123 = vlog2.pop %v120
    %v124 = vmul.f32 %v123, 0.6931472
    %v125 = vadd.f32 %v122, 10.0
    %v126 = vadd.f32 %v124, 10.0
    %v127 = vmul.f32 %v60, %v63
    %v128 = vsel %vm29, %v127, 0.0
    %129 = vadd.xlane.f32.xlu0 %v128
    %v130 = vpop.xlane.xlu0 %129
    %vm131 = vcmask 7168
    %v132 = vsel %vm131, %v125, 0.0
    %v133 = vsel %vm131, %v126, 0.0
    %v134 = vadd.f32 %v132, %v133
    %135 = vadd.xlane.f32.xlu0 %v134
    %v136 = vpop.xlane.xlu0 %135
    %v137 = vrot.slane %v136, 4
    %v138 = vadd.f32 %v136, %v137
    %v139 = vrot.slane %v138, 2
    %v140 = vadd.f32 %v138, %v139
    %v141 = vrot.slane %v140, 1
    %v142 = vadd.f32 %v140, %v141
    %s143 = vtos %v142
    %v144 = vsel %vm131, %v130, 0.0
    %145 = vadd.xlane.f32.xlu0 %v144
    %v146 = vpop.xlane.xlu0 %145
    %v147 = vrot.slane %v146, 4
    %v148 = vadd.f32 %v146, %v147
    %v149 = vrot.slane %v148, 2
    %v150 = vadd.f32 %v148, %v149
    %v151 = vrot.slane %v150, 1
    %v152 = vadd.f32 %v150, %v151
    %s153 = vtos %v152
    %s154 = smul.f32 %s153, 2.0
    %s155 = ssub.f32 %s143, %s154
    %v156 = vrcp.pop 16.0
    %v157 = vmul.f32 16.0, %v156
    %v158 = vsub.f32 1.0, %v157
    %v159 = vmul.f32 %v156, %v158
    %v160 = vadd.f32 %v156, %v159
    %vm161 = vweird.f32 %v156
    %v162 = vsel %vm161, %v156, %v160
    %s163 = vtos %v162
    %s164 = smul.f32 %s155, %s163
    %s165 = scalar_lea.smem [#allocation5], 0
    %166 = sst [smem:[%s165]] %s164
    // Predicated region
    $region10: #{tpu_custom_call.1} parent=1 // pred_check
      _
    $region11: #{tpu_custom_call.1} parent=1 // pred_check_branch
      %168 = sbr.rel (0) target = $region13
    $region12: #{tpu_custom_call.1} parent=1 // pred_region
      %170 = vsyncadd [#allocation4], 0
      %s172 = sshll.u32 %s1, 4
      %s173 = int_to_ptr.hbm [resolvable:$true] %s172
      %175 = dma.smem_to_hbm [#allocation5], 16, %s173, [#allocation4]
    $region13: #{tpu_custom_call.1} parent=1 // pred_fallthru
      _
    // Predicated region
    $region14: #{tpu_custom_call.1} parent=1 // pred_check
      _
    $region15: #{tpu_custom_call.1} parent=1 // pred_check_branch
      %177 = sbr.rel (0) target = $region17
    $region16: #{tpu_custom_call.1} parent=1 // pred_region
      %179 = dma.done [#allocation4], 16
    $region17: #{tpu_custom_call.1} parent=1 // pred_fallthru
      _
    %180 = sfence
    %181 = vsyncpa [#allocation3], 1
    %182 = vsyncpa [#allocation4], 1

</llo_original>
